<compile_context>
chip_gen: v7x
topology: tpu7x:2x2x1
jax: 0.10.0
libtpu: 0.0.40
codegen_flags: <defaults>
</compile_context>

<pallas_src>
import functools

import jax
import jax.numpy as jnp
from jax.experimental import pallas as pl
from jax.experimental.pallas import tpu as pltpu


def _attention_kernel(x_ref, w_ref, b_ref, o_ref, attn_ref, *,
                      num_head, dh, bblk, L, H):
    """One grid step == `bblk` batch elements.

    x_ref:    (bblk, L, E)   bf16
    w_ref:    (E, 2H)        bf16  fused [W.T | fc.T]
    b_ref:    (1, 2H)        f32   fused [w_bias | fc_bias]
    o_ref:    (bblk, L, H)   f32
    attn_ref: (bblk, num_head, L, L) f32
    """
    E = x_ref.shape[-1]

    # One fused bf16 MXU matmul for both projections, f32 accumulation.
    x2 = x_ref[...].reshape(bblk * L, E)
    proj = jnp.dot(x2, w_ref[...], preferred_element_type=jnp.float32) + b_ref[0]
    proj = proj.reshape(bblk, L, 2 * H)
    xp = proj[:, :, :H]        # (bblk, L, H) f32 -- q = k = v source
    res = proj[:, :, H:]       # (bblk, L, H) f32 -- residual branch (fc)
    # TODO(synk): drop_attn / drop_res are identity here (inference mode).

    av_parts = []
    for h in range(num_head):                       # num_head is small -> static unroll
        qb = xp[:, :, h * dh:(h + 1) * dh].astype(jnp.bfloat16)   # (bblk, L, dh)
        s = jnp.einsum('bld,bmd->blm', qb, qb,
                       preferred_element_type=jnp.float32)         # (bblk, L, L)
        s = s - jnp.max(s, axis=-1, keepdims=True)
        e = jnp.exp(s)
        attn = e / jnp.sum(e, axis=-1, keepdims=True)              # exact softmax, f32
        attn_ref[:, h] = attn                                      # per-head attn map
        av_parts.append(jnp.einsum('blm,bmd->bld', attn.astype(jnp.bfloat16), qb,
                                   preferred_element_type=jnp.float32))

    # Single lane-dense store of the full (bblk, L, H) output block.
    av = jnp.concatenate(av_parts, axis=-1)
    o_ref[...] = jnp.maximum(av + res, 0.0)


def _vmem_cap_bytes():
    """Physical VMEM of the running chip with ~25% headroom for compiler scratch:
    ~48 MiB on v7x (64 MiB physical), ~96 MiB on v5e/v6e (128 MiB physical)."""
    phys = 64 * 1024 * 1024
    try:
        info_bytes = int(pltpu.get_tpu_info().vmem_capacity_bytes)
        if info_bytes > 0:
            phys = info_bytes
    except Exception:
        pass
    return (phys * 3) // 4


def _step_vmem_bytes(b, L, E, H, num_head):
    """Double-buffered per-grid-step VMEM footprint estimate."""
    return (2 * b * L * E * 2                        # x block (bf16)
            + 2 * (E * 2 * H * 2 + 2 * H * 4)        # fused weights (bf16) + bias (f32)
            + 2 * b * L * H * 4                      # o block (f32)
            + 2 * b * num_head * L * L * 4)          # attn block (f32)


def _pick_batch_block(bs, L, num_head, E, H, vmem_cap, target_rows=256, min_steps=4):
    """Largest divisor of bs with bblk*L <= ~target_rows (MXU M-fill), keeping
    >= min_steps grid steps when bs allows (>=2 steps per TC after megacore sharding
    on v7x), and small enough that the double-buffered step footprint fits in VMEM."""
    divisors = [d for d in range(1, bs + 1) if bs % d == 0]
    want = max(1, target_rows // max(L, 1))
    cands = [d for d in divisors if d <= want] or [1]
    bblk = max(cands)
    if bs // bblk < min_steps:
        stepped = [d for d in divisors if bs // d >= min_steps]
        if stepped:
            bblk = max(stepped)
    while bblk > 1 and _step_vmem_bytes(bblk, L, E, H, num_head) > vmem_cap // 2:
        smaller = [d for d in divisors if d < bblk]
        if not smaller:
            break
        bblk = max(smaller)
    return bblk


def attention_forward(x, w_weight, w_bias, fc_weight, fc_bias, num_head,
                      batch_block=None):
    bs, L, E = x.shape
    H = w_weight.shape[0]
    assert H % num_head == 0, "`hidden_size` must be a multiple of `num_head`"
    dh = H // num_head

    vmem_cap = _vmem_cap_bytes()
    if batch_block is None:
        batch_block = _pick_batch_block(bs, L, num_head, E, H, vmem_cap)
    assert bs % batch_block == 0
    grid_b = bs // batch_block

    # Fuse the two projections: one pre-transposed (E, 2H) weight and a (1, 2H) bias.
    # Weights and x feed the MXU as bf16 (f32 accumulation in-kernel); biases stay f32.
    w_cat = jnp.concatenate([jnp.asarray(w_weight).T, jnp.asarray(fc_weight).T],
                            axis=1).astype(jnp.bfloat16)           # (E, 2H)
    b_cat = jnp.concatenate([jnp.asarray(w_bias), jnp.asarray(fc_bias)]
                            ).reshape(1, 2 * H).astype(jnp.float32)
    x_bf = jnp.asarray(x).astype(jnp.bfloat16)

    kernel = functools.partial(_attention_kernel, num_head=num_head, dh=dh,
                               bblk=batch_block, L=L, H=H)

    # Advisory cost for the XLA scheduler.
    flops = int(2 * bs * L * E * (2 * H)                 # fused projection
                + 4 * bs * num_head * L * L * dh)        # scores + attn @ v
    transcendentals = int(bs * num_head * L * L)         # exp per score element
    bytes_accessed = int(2 * (x_bf.size + w_cat.size) + 4 * b_cat.size
                         + 4 * (bs * L * H + bs * num_head * L * L))

    blk_bytes = _step_vmem_bytes(batch_block, L, E, H, num_head)
    vmem_limit = int(min(max(4 * blk_bytes, 32 * 1024 * 1024), vmem_cap))

    o, attn = pl.pallas_call(
        kernel,
        out_shape=(
            jax.ShapeDtypeStruct((bs, L, H), jnp.float32),
            jax.ShapeDtypeStruct((bs, num_head, L, L), jnp.float32),
        ),
        grid_spec=pltpu.PrefetchScalarGridSpec(
            num_scalar_prefetch=0,
            grid=(grid_b,),
            in_specs=[
                pl.BlockSpec((batch_block, L, E), lambda b: (b, 0, 0)),
                pl.BlockSpec((E, 2 * H), lambda b: (0, 0)),
                pl.BlockSpec((1, 2 * H), lambda b: (0, 0)),
            ],
            out_specs=[
                pl.BlockSpec((batch_block, L, H), lambda b: (b, 0, 0)),
                pl.BlockSpec((batch_block, num_head, L, L),
                             lambda b: (b, 0, 0, 0)),
            ],
        ),
        compiler_params=pltpu.CompilerParams(
            dimension_semantics=("parallel",),
            vmem_limit_bytes=vmem_limit),
        cost_estimate=pl.CostEstimate(
            flops=flops,
            transcendentals=transcendentals,
            bytes_accessed=bytes_accessed),
    )(x_bf, w_cat, b_cat)
    return o, attn


def reference_forward(x, w_weight, w_bias, fc_weight, fc_bias, num_head):
    bs, L, E = x.shape
    H = w_weight.shape[0]
    dh = H // num_head
    xp = x @ w_weight.T + w_bias                                   # (bs, L, H)
    xp = xp.reshape(bs, L, num_head, dh).transpose(0, 2, 1, 3)     # (bs, nh, L, dh)
    s = jnp.einsum('bhld,bhmd->bhlm', xp, xp)
    attn = jax.nn.softmax(s, axis=-1)
    av = jnp.einsum('bhlm,bhmd->bhld', attn, xp)
    av = av.transpose(0, 2, 1, 3).reshape(bs, L, H)
    res = x @ fc_weight.T + fc_bias
    return jax.nn.relu(av + res), attn


if __name__ == "__main__":
    key = jax.random.PRNGKey(0)
    bs, L, E = 4, 8, 32
    hidden, num_head = 32, 4

    k1, k2, k3, k4, k5 = jax.random.split(key, 5)
    x = jax.random.normal(k1, (bs, L, E), dtype=jnp.float32)
    w_weight = jax.random.normal(k2, (hidden, E), dtype=jnp.float32) * 0.1
    w_bias = jax.random.normal(k3, (hidden,), dtype=jnp.float32) * 0.1
    fc_weight = jax.random.normal(k4, (hidden, E), dtype=jnp.float32) * 0.1
    fc_bias = jax.random.normal(k5, (hidden,), dtype=jnp.float32) * 0.1

    o, attn = attention_forward(x, w_weight, w_bias, fc_weight, fc_bias, num_head)
    jax.block_until_ready((o, attn))

    o_ref, attn_ref = reference_forward(x, w_weight, w_bias, fc_weight, fc_bias,
                                        num_head)
    assert o.shape == (bs, L, hidden) and attn.shape == (bs, num_head, L, L)
    # Kernel runs its matmuls with bf16 operands (f32 accumulation); the reference is
    # pure f32, so tolerances are set at bf16-operand level.
    assert jnp.allclose(o, o_ref, atol=5e-2, rtol=5e-2), "output mismatch"
    assert jnp.allclose(attn, attn_ref, atol=5e-2, rtol=5e-2), "attn mismatch"
    print("KERNEL_OK")
</pallas_src>

<mosaic_0001>
module attributes {stable_mosaic.version = 11 : i64} {
  func.func @_attention_kernel(%arg0: i32, %arg1: memref<1x8x32xbf16, #tpu.memory_space<vmem>>, %arg2: memref<32x64xbf16, #tpu.memory_space<vmem>>, %arg3: memref<1x64xf32, #tpu.memory_space<vmem>>, %arg4: memref<1x8x32xf32, #tpu.memory_space<vmem>>, %arg5: memref<1x4x8x8xf32, #tpu.memory_space<vmem>>) attributes {dimension_semantics = [#tpu.dimension_semantics<parallel>], iteration_bounds = array<i64: 4>, scalar_prefetch = 0 : i64, scratch_operands = 0 : i64, tpu.core_type = #tpu.core_type<tc>, window_params = [{transform_indices = @transform_0, window_bounds = array<i64: 1, 8, 32>}, {pipeline_mode = #tpu.pipeline_mode<synchronous>, transform_indices = @transform_1, window_bounds = array<i64: 32, 64>}, {pipeline_mode = #tpu.pipeline_mode<synchronous>, transform_indices = @transform_2, window_bounds = array<i64: 1, 64>}, {transform_indices = @transform_3, window_bounds = array<i64: 1, 8, 32>}, {transform_indices = @transform_4, window_bounds = array<i64: 1, 4, 8, 8>}]} {
    %c0 = arith.constant 0 : index
    %c0_0 = arith.constant 0 : index
    %c0_1 = arith.constant 0 : index
    %0 = vector.load %arg1[%c0, %c0_0, %c0_1] : memref<1x8x32xbf16, #tpu.memory_space<vmem>>, vector<1x8x32xbf16>
    %1 = vector.shape_cast %0 : vector<1x8x32xbf16> to vector<8x32xbf16>
    %c0_2 = arith.constant 0 : index
    %c0_3 = arith.constant 0 : index
    %2 = vector.load %arg2[%c0_2, %c0_3] : memref<32x64xbf16, #tpu.memory_space<vmem>>, vector<32x64xbf16>
    %cst = arith.constant dense<0.000000e+00> : vector<8x64xf32>
    %3 = tpu.matmul %1, %2, %cst {dimension_numbers = #tpu.dot_dimension_numbers<[1], [0], [0], [1], [0, 0, 1, 1], [], []>} : vector<8x32xbf16>, vector<32x64xbf16>, vector<8x64xf32> -> vector<8x64xf32>
    %c0_4 = arith.constant 0 : index
    %c0_5 = arith.constant 0 : index
    %4 = vector.load %arg3[%c0_4, %c0_5] : memref<1x64xf32, #tpu.memory_space<vmem>>, vector<1x64xf32>
    %5 = vector.shape_cast %4 : vector<1x64xf32> to vector<64xf32>
    %6 = vector.shape_cast %5 : vector<64xf32> to vector<1x64xf32>
    %7 = vector.broadcast %6 : vector<1x64xf32> to vector<8x64xf32>
    %8 = arith.addf %3, %7 : vector<8x64xf32>
    %9 = vector.shape_cast %8 : vector<8x64xf32> to vector<1x8x64xf32>
    %10 = vector.extract_strided_slice %9 {offsets = [0, 0, 0], sizes = [1, 8, 32], strides = [1, 1, 1]} : vector<1x8x64xf32> to vector<1x8x32xf32>
    %11 = vector.extract_strided_slice %9 {offsets = [0, 0, 32], sizes = [1, 8, 32], strides = [1, 1, 1]} : vector<1x8x64xf32> to vector<1x8x32xf32>
    %12 = vector.extract_strided_slice %10 {offsets = [0, 0, 0], sizes = [1, 8, 8], strides = [1, 1, 1]} : vector<1x8x32xf32> to vector<1x8x8xf32>
    %13 = arith.truncf %12 : vector<1x8x8xf32> to vector<1x8x8xbf16>
    "tpu.trace_start"() <{level = 10 : i32, message = "bld,bmd->blm"}> : () -> ()
    %cst_6 = arith.constant dense<0.000000e+00> : vector<1x8x8xf32>
    %14 = tpu.matmul %13, %13, %cst_6 {dimension_numbers = #tpu.dot_dimension_numbers<[2], [2], [1], [1], [0, 0, 0, 1, 1, 1], [0], [0]>} : vector<1x8x8xbf16>, vector<1x8x8xbf16>, vector<1x8x8xf32> -> vector<1x8x8xf32>
    "tpu.trace_stop"() : () -> ()
    %cst_7 = arith.constant dense<0xFF800000> : vector<1x8xf32>
    %15 = vector.multi_reduction <maximumf>, %14, %cst_7 [2] : vector<1x8x8xf32> to vector<1x8xf32>
    %16 = vector.shape_cast %15 : vector<1x8xf32> to vector<1x8x1xf32>
    %17 = vector.broadcast %16 : vector<1x8x1xf32> to vector<1x8x8xf32>
    %18 = arith.subf %14, %17 : vector<1x8x8xf32>
    %19 = math.exp %18 : vector<1x8x8xf32>
    %cst_8 = arith.constant dense<0.000000e+00> : vector<1x8xf32>
    %20 = vector.multi_reduction <add>, %19, %cst_8 [2] : vector<1x8x8xf32> to vector<1x8xf32>
    %21 = vector.shape_cast %20 : vector<1x8xf32> to vector<1x8x1xf32>
    %22 = vector.broadcast %21 : vector<1x8x1xf32> to vector<1x8x8xf32>
    %23 = arith.divf %19, %22 : vector<1x8x8xf32>
    %c0_9 = arith.constant 0 : index
    %c0_10 = arith.constant 0 : index
    %c0_11 = arith.constant 0 : index
    %c0_12 = arith.constant 0 : index
    %24 = vector.load %arg5[%c0_9, %c0_10, %c0_11, %c0_12] : memref<1x4x8x8xf32, #tpu.memory_space<vmem>>, vector<1x1x8x8xf32>
    %25 = vector.shape_cast %24 : vector<1x1x8x8xf32> to vector<1x8x8xf32>
    %26 = vector.shape_cast %23 : vector<1x8x8xf32> to vector<1x1x8x8xf32>
    tpu.vector_store %arg5[%c0_9, %c0_10, %c0_11, %c0_12], %26 {strides = array<i32>} : memref<1x4x8x8xf32, #tpu.memory_space<vmem>>, vector<1x1x8x8xf32>,
    %27 = arith.truncf %23 : vector<1x8x8xf32> to vector<1x8x8xbf16>
    "tpu.trace_start"() <{level = 10 : i32, message = "blm,bmd->bld"}> : () -> ()
    %cst_13 = arith.constant dense<0.000000e+00> : vector<1x8x8xf32>
    %28 = tpu.matmul %27, %13, %cst_13 {dimension_numbers = #tpu.dot_dimension_numbers<[2], [1], [1], [2], [0, 0, 0, 1, 1, 2], [0], [0]>} : vector<1x8x8xbf16>, vector<1x8x8xbf16>, vector<1x8x8xf32> -> vector<1x8x8xf32>
    "tpu.trace_stop"() : () -> ()
    %29 = vector.extract_strided_slice %10 {offsets = [0, 0, 8], sizes = [1, 8, 8], strides = [1, 1, 1]} : vector<1x8x32xf32> to vector<1x8x8xf32>
    %30 = arith.truncf %29 : vector<1x8x8xf32> to vector<1x8x8xbf16>
    "tpu.trace_start"() <{level = 10 : i32, message = "bld,bmd->blm"}> : () -> ()
    %cst_14 = arith.constant dense<0.000000e+00> : vector<1x8x8xf32>
    %31 = tpu.matmul %30, %30, %cst_14 {dimension_numbers = #tpu.dot_dimension_numbers<[2], [2], [1], [1], [0, 0, 0, 1, 1, 1], [0], [0]>} : vector<1x8x8xbf16>, vector<1x8x8xbf16>, vector<1x8x8xf32> -> vector<1x8x8xf32>
    "tpu.trace_stop"() : () -> ()
    %cst_15 = arith.constant dense<0xFF800000> : vector<1x8xf32>
    %32 = vector.multi_reduction <maximumf>, %31, %cst_15 [2] : vector<1x8x8xf32> to vector<1x8xf32>
    %33 = vector.shape_cast %32 : vector<1x8xf32> to vector<1x8x1xf32>
    %34 = vector.broadcast %33 : vector<1x8x1xf32> to vector<1x8x8xf32>
    %35 = arith.subf %31, %34 : vector<1x8x8xf32>
    %36 = math.exp %35 : vector<1x8x8xf32>
    %cst_16 = arith.constant dense<0.000000e+00> : vector<1x8xf32>
    %37 = vector.multi_reduction <add>, %36, %cst_16 [2] : vector<1x8x8xf32> to vector<1x8xf32>
    %38 = vector.shape_cast %37 : vector<1x8xf32> to vector<1x8x1xf32>
    %39 = vector.broadcast %38 : vector<1x8x1xf32> to vector<1x8x8xf32>
    %40 = arith.divf %36, %39 : vector<1x8x8xf32>
    %c0_17 = arith.constant 0 : index
    %c1 = arith.constant 1 : index
    %c0_18 = arith.constant 0 : index
    %c0_19 = arith.constant 0 : index
    %41 = vector.load %arg5[%c0_17, %c1, %c0_18, %c0_19] : memref<1x4x8x8xf32, #tpu.memory_space<vmem>>, vector<1x1x8x8xf32>
    %42 = vector.shape_cast %41 : vector<1x1x8x8xf32> to vector<1x8x8xf32>
    %43 = vector.shape_cast %40 : vector<1x8x8xf32> to vector<1x1x8x8xf32>
    tpu.vector_store %arg5[%c0_17, %c1, %c0_18, %c0_19], %43 {strides = array<i32>} : memref<1x4x8x8xf32, #tpu.memory_space<vmem>>, vector<1x1x8x8xf32>,
    %44 = arith.truncf %40 : vector<1x8x8xf32> to vector<1x8x8xbf16>
    "tpu.trace_start"() <{level = 10 : i32, message = "blm,bmd->bld"}> : () -> ()
    %cst_20 = arith.constant dense<0.000000e+00> : vector<1x8x8xf32>
    %45 = tpu.matmul %44, %30, %cst_20 {dimension_numbers = #tpu.dot_dimension_numbers<[2], [1], [1], [2], [0, 0, 0, 1, 1, 2], [0], [0]>} : vector<1x8x8xbf16>, vector<1x8x8xbf16>, vector<1x8x8xf32> -> vector<1x8x8xf32>
    "tpu.trace_stop"() : () -> ()
    %46 = vector.extract_strided_slice %10 {offsets = [0, 0, 16], sizes = [1, 8, 8], strides = [1, 1, 1]} : vector<1x8x32xf32> to vector<1x8x8xf32>
    %47 = arith.truncf %46 : vector<1x8x8xf32> to vector<1x8x8xbf16>
    "tpu.trace_start"() <{level = 10 : i32, message = "bld,bmd->blm"}> : () -> ()
    %cst_21 = arith.constant dense<0.000000e+00> : vector<1x8x8xf32>
    %48 = tpu.matmul %47, %47, %cst_21 {dimension_numbers = #tpu.dot_dimension_numbers<[2], [2], [1], [1], [0, 0, 0, 1, 1, 1], [0], [0]>} : vector<1x8x8xbf16>, vector<1x8x8xbf16>, vector<1x8x8xf32> -> vector<1x8x8xf32>
    "tpu.trace_stop"() : () -> ()
    %cst_22 = arith.constant dense<0xFF800000> : vector<1x8xf32>
    %49 = vector.multi_reduction <maximumf>, %48, %cst_22 [2] : vector<1x8x8xf32> to vector<1x8xf32>
    %50 = vector.shape_cast %49 : vector<1x8xf32> to vector<1x8x1xf32>
    %51 = vector.broadcast %50 : vector<1x8x1xf32> to vector<1x8x8xf32>
    %52 = arith.subf %48, %51 : vector<1x8x8xf32>
    %53 = math.exp %52 : vector<1x8x8xf32>
    %cst_23 = arith.constant dense<0.000000e+00> : vector<1x8xf32>
    %54 = vector.multi_reduction <add>, %53, %cst_23 [2] : vector<1x8x8xf32> to vector<1x8xf32>
    %55 = vector.shape_cast %54 : vector<1x8xf32> to vector<1x8x1xf32>
    %56 = vector.broadcast %55 : vector<1x8x1xf32> to vector<1x8x8xf32>
    %57 = arith.divf %53, %56 : vector<1x8x8xf32>
    %c0_24 = arith.constant 0 : index
    %c2 = arith.constant 2 : index
    %c0_25 = arith.constant 0 : index
    %c0_26 = arith.constant 0 : index
    %58 = vector.load %arg5[%c0_24, %c2, %c0_25, %c0_26] : memref<1x4x8x8xf32, #tpu.memory_space<vmem>>, vector<1x1x8x8xf32>
    %59 = vector.shape_cast %58 : vector<1x1x8x8xf32> to vector<1x8x8xf32>
    %60 = vector.shape_cast %57 : vector<1x8x8xf32> to vector<1x1x8x8xf32>
    tpu.vector_store %arg5[%c0_24, %c2, %c0_25, %c0_26], %60 {strides = array<i32>} : memref<1x4x8x8xf32, #tpu.memory_space<vmem>>, vector<1x1x8x8xf32>,
    %61 = arith.truncf %57 : vector<1x8x8xf32> to vector<1x8x8xbf16>
    "tpu.trace_start"() <{level = 10 : i32, message = "blm,bmd->bld"}> : () -> ()
    %cst_27 = arith.constant dense<0.000000e+00> : vector<1x8x8xf32>
    %62 = tpu.matmul %61, %47, %cst_27 {dimension_numbers = #tpu.dot_dimension_numbers<[2], [1], [1], [2], [0, 0, 0, 1, 1, 2], [0], [0]>} : vector<1x8x8xbf16>, vector<1x8x8xbf16>, vector<1x8x8xf32> -> vector<1x8x8xf32>
    "tpu.trace_stop"() : () -> ()
    %63 = vector.extract_strided_slice %10 {offsets = [0, 0, 24], sizes = [1, 8, 8], strides = [1, 1, 1]} : vector<1x8x32xf32> to vector<1x8x8xf32>
    %64 = arith.truncf %63 : vector<1x8x8xf32> to vector<1x8x8xbf16>
    "tpu.trace_start"() <{level = 10 : i32, message = "bld,bmd->blm"}> : () -> ()
    %cst_28 = arith.constant dense<0.000000e+00> : vector<1x8x8xf32>
    %65 = tpu.matmul %64, %64, %cst_28 {dimension_numbers = #tpu.dot_dimension_numbers<[2], [2], [1], [1], [0, 0, 0, 1, 1, 1], [0], [0]>} : vector<1x8x8xbf16>, vector<1x8x8xbf16>, vector<1x8x8xf32> -> vector<1x8x8xf32>
    "tpu.trace_stop"() : () -> ()
    %cst_29 = arith.constant dense<0xFF800000> : vector<1x8xf32>
    %66 = vector.multi_reduction <maximumf>, %65, %cst_29 [2] : vector<1x8x8xf32> to vector<1x8xf32>
    %67 = vector.shape_cast %66 : vector<1x8xf32> to vector<1x8x1xf32>
    %68 = vector.broadcast %67 : vector<1x8x1xf32> to vector<1x8x8xf32>
    %69 = arith.subf %65, %68 : vector<1x8x8xf32>
    %70 = math.exp %69 : vector<1x8x8xf32>
    %cst_30 = arith.constant dense<0.000000e+00> : vector<1x8xf32>
    %71 = vector.multi_reduction <add>, %70, %cst_30 [2] : vector<1x8x8xf32> to vector<1x8xf32>
    %72 = vector.shape_cast %71 : vector<1x8xf32> to vector<1x8x1xf32>
    %73 = vector.broadcast %72 : vector<1x8x1xf32> to vector<1x8x8xf32>
    %74 = arith.divf %70, %73 : vector<1x8x8xf32>
    %c0_31 = arith.constant 0 : index
    %c3 = arith.constant 3 : index
    %c0_32 = arith.constant 0 : index
    %c0_33 = arith.constant 0 : index
    %75 = vector.load %arg5[%c0_31, %c3, %c0_32, %c0_33] : memref<1x4x8x8xf32, #tpu.memory_space<vmem>>, vector<1x1x8x8xf32>
    %76 = vector.shape_cast %75 : vector<1x1x8x8xf32> to vector<1x8x8xf32>
    %77 = vector.shape_cast %74 : vector<1x8x8xf32> to vector<1x1x8x8xf32>
    tpu.vector_store %arg5[%c0_31, %c3, %c0_32, %c0_33], %77 {strides = array<i32>} : memref<1x4x8x8xf32, #tpu.memory_space<vmem>>, vector<1x1x8x8xf32>,
    %78 = arith.truncf %74 : vector<1x8x8xf32> to vector<1x8x8xbf16>
    "tpu.trace_start"() <{level = 10 : i32, message = "blm,bmd->bld"}> : () -> ()
    %cst_34 = arith.constant dense<0.000000e+00> : vector<1x8x8xf32>
    %79 = tpu.matmul %78, %64, %cst_34 {dimension_numbers = #tpu.dot_dimension_numbers<[2], [1], [1], [2], [0, 0, 0, 1, 1, 2], [0], [0]>} : vector<1x8x8xbf16>, vector<1x8x8xbf16>, vector<1x8x8xf32> -> vector<1x8x8xf32>
    "tpu.trace_stop"() : () -> ()
    %80 = tpu.concatenate %28, %45, %62, %79 in 2 : vector<1x8x8xf32>, vector<1x8x8xf32>, vector<1x8x8xf32>, vector<1x8x8xf32> -> vector<1x8x32xf32>
    %81 = arith.addf %80, %11 : vector<1x8x32xf32>
    %cst_35 = arith.constant 0.000000e+00 : f32
    %82 = vector.broadcast %cst_35 : f32 to vector<1x8x32xf32>
    %83 = arith.maximumf %81, %82 : vector<1x8x32xf32>
    %c0_36 = arith.constant 0 : index
    %c0_37 = arith.constant 0 : index
    %c0_38 = arith.constant 0 : index
    %84 = vector.load %arg4[%c0_36, %c0_37, %c0_38] : memref<1x8x32xf32, #tpu.memory_space<vmem>>, vector<1x8x32xf32>
    tpu.vector_store %arg4[%c0_36, %c0_37, %c0_38], %83 {strides = array<i32>} : memref<1x8x32xf32, #tpu.memory_space<vmem>>, vector<1x8x32xf32>,
    return
  }
  func.func @transform_0(%arg0: i32) -> (i32, i32, i32) {
    %c0_i32 = arith.constant 0 : i32
    %c0_i32_0 = arith.constant 0 : i32
    %c0_i32_1 = arith.constant 0 : i32
    return %arg0, %c0_i32, %c0_i32_0 : i32, i32, i32
  }
  func.func @transform_1(%arg0: i32) -> (i32, i32) {
    %c0_i32 = arith.constant 0 : i32
    %c0_i32_0 = arith.constant 0 : i32
    %c0_i32_1 = arith.constant 0 : i32
    return %c0_i32, %c0_i32_0 : i32, i32
  }
  func.func @transform_2(%arg0: i32) -> (i32, i32) {
    %c0_i32 = arith.constant 0 : i32
    %c0_i32_0 = arith.constant 0 : i32
    %c0_i32_1 = arith.constant 0 : i32
    return %c0_i32, %c0_i32_0 : i32, i32
  }
  func.func @transform_3(%arg0: i32) -> (i32, i32, i32) {
    %c0_i32 = arith.constant 0 : i32
    %c0_i32_0 = arith.constant 0 : i32
    %c0_i32_1 = arith.constant 0 : i32
    return %arg0, %c0_i32, %c0_i32_0 : i32, i32, i32
  }
  func.func @transform_4(%arg0: i32) -> (i32, i32, i32, i32) {
    %c0_i32 = arith.constant 0 : i32
    %c0_i32_0 = arith.constant 0 : i32
    %c0_i32_1 = arith.constant 0 : i32
    %c0_i32_2 = arith.constant 0 : i32
    return %arg0, %c0_i32, %c0_i32_0, %c0_i32_1 : i32, i32, i32, i32
  }
}

</mosaic_0001>

<llo_original>
// kernel: tpu_custom_call.1
$region0: #{tpu_custom_call.1}
  #allocation0 [shape = 'u32[]', space=smem, size = 0x4, offset = 0x4, fixed_abs, tag = 'smem constant byte address 0x4 - core index']
  #allocation1 [shape = 'u32[144,128]{1,0:T(1,128)}', space=vmem, size = 0x12000, scoped, tag = 'internal scratch']
  %s0 = inlined_call_operand.hbm [shape: bf16[4,8,32], index: 0, kind: input, shape index: {}]
  %s1 = inlined_call_operand.hbm [shape: bf16[32,64], index: 1, kind: input, shape index: {}]
  %s2 = inlined_call_operand.vmem [shape: f32[1,64], index: 2, kind: input, shape index: {}]
  %s3 = inlined_call_operand.hbm [shape: f32[4,8,32], index: 3, kind: output, shape index: {0}]
  %s4 = inlined_call_operand.hbm [shape: f32[4,4,8,8], index: 4, kind: output, shape index: {1}]
  %5 = xla_tuple %s3, %s4
  %s6 = sld [smem:[#allocation0]]
  $region61: #{tpu_custom_call.1} parent=0
    _
  %s8 = ssub.s32 1, %s6
  %s9 = scalar_select 0, %s8, %s6
  $region1: #{tpu_custom_call.1} parent=0
    #allocation2 [shape = 'u8[4096]{0}', space=vmem, size = 0x1000, scoped, tag = 'input window, operand 0']
    #allocation3 [shape = 's32[2]{0}', space=sflag, size = 0x8, scoped, tag = 'scoped memory for tpu_custom_call.1']
    #allocation4 [shape = 's32[2]{0}', space=sflag, size = 0x8, scoped, tag = 'scoped memory for tpu_custom_call.1']
    #allocation5 [shape = 'u8[8192]{0}', space=vmem, size = 0x2000, scoped, tag = 'input window, operand 1, single buffered']
    #allocation6 [shape = 's32[1]{0}', space=sflag, size = 0x4, scoped, tag = 'scoped memory for tpu_custom_call.1']
    #allocation7 [shape = 'u8[8192]{0}', space=vmem, size = 0x2000, scoped, tag = 'output window, operand 0']
    #allocation8 [shape = 'u8[32768]{0}', space=vmem, size = 0x8000, scoped, tag = 'output window, operand 1']
    #allocation9 [shape = 's32[2]{0}', space=sflag, size = 0x8, scoped, tag = 'scoped memory for tpu_custom_call.1']
    %10 = vsyncpa [#allocation3], 0
    %s11 = scalar_lea.sflag [#allocation3], 1
    %12 = vsyncpa %s11, 0
    %13 = vsyncpa [#allocation6], 0
    %14 = vsyncpa [#allocation4], 0
    %s15 = scalar_lea.sflag [#allocation4], 1
    %16 = vsyncpa %s15, 0
    %17 = vsyncpa [#allocation9], 0
    %s18 = scalar_lea.sflag [#allocation9], 1
    %19 = vsyncpa %s18, 0
    loop: start=0, step=1, limit=6
    $region2: #{tpu_custom_call.1} parent=1 // loop_pre_header
      _
    $region3: #{tpu_custom_call.1} parent=1 // loop_header
      %s21 = sphi 0, %s25
      %p22 = scmp.ge.s32.totalorder %s21, 6
      %s31 = sphi 0, %s33
      %s34 = sphi 0, %s31
      %s35 = sphi 0, %s34
      %s51 = sphi 0, %s35
      %s55 = sphi 0, %s55
      %s57 = sphi 0, %s55
      %s58 = sphi 0, %s57
      %s72 = sphi 0, %s58
      %s76 = sphi 0, %s76
      %s78 = sphi 0, %s76
      %s79 = sphi 0, %s78
      %s93 = sphi 0, %s79
      %s99 = sphi 0, %s101
      %s102 = sphi 0, %s99
      %s103 = sphi 0, %s102
      %s119 = sphi 0, %s103
      %s125 = sphi 0, %s127
      %s128 = sphi 0, %s125
      %s129 = sphi 0, %s128
      %s145 = sphi 0, %s129
    $region4: #{tpu_custom_call.1} parent=1 // loop_header_branch
      %24 = sbr.rel (%p22) target = $region8
    $region5: #{tpu_custom_call.1} parent=1 // loop_body
      %s26 = ssub.s32 %s21, 1
      %s27 = ssub.s32 %s21, 2
      %s28 = sadd.s32 %s21, 1
      %s29 = ssub.s32 %s21, %s28
      %p30 = scmp.eq.s32.totalorder %s29, 0
      %s32 = sadd.s32 %s31, 1
      %s33 = scalar_select %p30, %s31, %s32
      %p36 = pneg %p30
      %p37 = scmp.eq.s32.totalorder %s21, 3
      %p38 = por %p36, %p37
      %p39 = scmp.ne.s32.totalorder %s31, %s34
      %p40 = scmp.eq.s32.totalorder %s21, 0
      %p41 = por %p39, %p40
      %p42 = scmp.ne.s32.totalorder %s31, %s34
      %p43 = scmp.eq.s32.totalorder %s26, 3
      %p44 = por %p42, %p43
      %p45 = scmp.ne.s32.totalorder %s34, %s35
      %p46 = scmp.eq.s32.totalorder %s26, 0
      %p47 = por %p45, %p46
      %p48 = scmp.ne.s32.totalorder %s34, %s35
      %p49 = scmp.eq.s32.totalorder %s27, 3
      %p50 = por %p48, %p49
      %p52 = scmp.ne.s32.totalorder %s35, %s51
      %p53 = scmp.eq.s32.totalorder %s27, 0
      %p54 = por %p52, %p53
      %s56 = sadd.s32 %s55, 1
      %p59 = scmp.eq.s32.totalorder %s21, 3
      %p60 = scmp.ne.s32.totalorder %s55, %s57
      %p61 = scmp.eq.s32.totalorder %s21, 0
      %p62 = por %p60, %p61
      %p63 = scmp.ne.s32.totalorder %s55, %s57
      %p64 = scmp.eq.s32.totalorder %s26, 3
      %p65 = por %p63, %p64
      %p66 = scmp.ne.s32.totalorder %s57, %s58
      %p67 = scmp.eq.s32.totalorder %s26, 0
      %p68 = por %p66, %p67
      %p69 = scmp.ne.s32.totalorder %s57, %s58
      %p70 = scmp.eq.s32.totalorder %s27, 3
      %p71 = por %p69, %p70
      %p73 = scmp.ne.s32.totalorder %s58, %s72
      %p74 = scmp.eq.s32.totalorder %s27, 0
      %p75 = por %p73, %p74
      %s77 = sadd.s32 %s76, 1
      %p80 = scmp.eq.s32.totalorder %s21, 3
      %p81 = scmp.ne.s32.totalorder %s76, %s78
      %p82 = scmp.eq.s32.totalorder %s21, 0
      %p83 = por %p81, %p82
      %p84 = scmp.ne.s32.totalorder %s76, %s78
      %p85 = scmp.eq.s32.totalorder %s26, 3
      %p86 = por %p84, %p85
      %p87 = scmp.ne.s32.totalorder %s78, %s79
      %p88 = scmp.eq.s32.totalorder %s26, 0
      %p89 = por %p87, %p88
      %p90 = scmp.ne.s32.totalorder %s78, %s79
      %p91 = scmp.eq.s32.totalorder %s27, 3
      %p92 = por %p90, %p91
      %p94 = scmp.ne.s32.totalorder %s79, %s93
      %p95 = scmp.eq.s32.totalorder %s27, 0
      %p96 = por %p94, %p95
      %s97 = ssub.s32 %s21, %s28
      %p98 = scmp.eq.s32.totalorder %s97, 0
      %s100 = sadd.s32 %s99, 1
      %s101 = scalar_select %p98, %s99, %s100
      %p104 = pneg %p98
      %p105 = scmp.eq.s32.totalorder %s21, 3
      %p106 = por %p104, %p105
      %p107 = scmp.ne.s32.totalorder %s99, %s102
      %p108 = scmp.eq.s32.totalorder %s21, 0
      %p109 = por %p107, %p108
      %p110 = scmp.ne.s32.totalorder %s99, %s102
      %p111 = scmp.eq.s32.totalorder %s26, 3
      %p112 = por %p110, %p111
      %p113 = scmp.ne.s32.totalorder %s102, %s103
      %p114 = scmp.eq.s32.totalorder %s26, 0
      %p115 = por %p113, %p114
      %p116 = scmp.ne.s32.totalorder %s102, %s103
      %p117 = scmp.eq.s32.totalorder %s27, 3
      %p118 = por %p116, %p117
      %p120 = scmp.ne.s32.totalorder %s103, %s119
      %p121 = scmp.eq.s32.totalorder %s27, 0
      %p122 = por %p120, %p121
      %s123 = ssub.s32 %s21, %s28
      %p124 = scmp.eq.s32.totalorder %s123, 0
      %s126 = sadd.s32 %s125, 1
      %s127 = scalar_select %p124, %s125, %s126
      %p130 = pneg %p124
      %p131 = scmp.eq.s32.totalorder %s21, 3
      %p132 = por %p130, %p131
      %p133 = scmp.ne.s32.totalorder %s125, %s128
      %p134 = scmp.eq.s32.totalorder %s21, 0
      %p135 = por %p133, %p134
      %p136 = scmp.ne.s32.totalorder %s125, %s128
      %p137 = scmp.eq.s32.totalorder %s26, 3
      %p138 = por %p136, %p137
      %p139 = scmp.ne.s32.totalorder %s128, %s129
      %p140 = scmp.eq.s32.totalorder %s26, 0
      %p141 = por %p139, %p140
      %p142 = scmp.ne.s32.totalorder %s128, %s129
      %p143 = scmp.eq.s32.totalorder %s27, 3
      %p144 = por %p142, %p143
      %p146 = scmp.ne.s32.totalorder %s129, %s145
      %p147 = scmp.eq.s32.totalorder %s27, 0
      %p148 = por %p146, %p147
      %p149 = scmp.le.s32.totalorder 1, %s21
      %p150 = scmp.lt.s32.totalorder %s21, 5
      %p151 = pnand %p149, %p150
      %p152 = pneg %p151
      // Predicated region
      $region9: #{tpu_custom_call.1} parent=5 // pred_check
        _
      $region10: #{tpu_custom_call.1} parent=5 // pred_check_branch
        %154 = sbr.rel (%p151) target = $region12
      $region11: #{tpu_custom_call.1} parent=5 // pred_region
        %s155 = ssub.s32 %s21, 1
        // Predicated region
        $region13: #{tpu_custom_call.1} parent=11 // pred_check
          %p156 = pneg %p68
        $region14: #{tpu_custom_call.1} parent=11 // pred_check_branch
          %158 = sbr.rel (%p156) target = $region16
        $region15: #{tpu_custom_call.1} parent=11 // pred_region
          %s160 = ssub.s32 256, 256
          %161 = vsyncadd [#allocation6], %s160
          %s162 = sshll.u32 [#allocation5], 4
          %s163 = int_to_ptr.vmem [resolvable:$true] %s162
          %168 = dma.hbm_to_vmem [thread:$0]  %s1, 256, %s163, [#allocation6], 64, 64, 4
        $region16: #{tpu_custom_call.1} parent=11 // pred_fallthru
          _
        // Predicated region
        $region17: #{tpu_custom_call.1} parent=11 // pred_check
          %p169 = pneg %p89
        $region18: #{tpu_custom_call.1} parent=11 // pred_check_branch
          %171 = sbr.rel (%p169) target = $region20
        $region19: #{tpu_custom_call.1} parent=11 // pred_region
          _
        $region20: #{tpu_custom_call.1} parent=11 // pred_fallthru
          _
      $region12: #{tpu_custom_call.1} parent=5 // pred_fallthru
        _
      %p172 = scmp.lt.s32.totalorder %s21, 4
      // Predicated region
      $region21: #{tpu_custom_call.1} parent=5 // pred_check
        %p173 = pneg %p172
      $region22: #{tpu_custom_call.1} parent=5 // pred_check_branch
        %175 = sbr.rel (%p173) target = $region24
      $region23: #{tpu_custom_call.1} parent=5 // pred_region
        // Predicated region
        $region25: #{tpu_custom_call.1} parent=23 // pred_check
          %p176 = pneg %p41
        $region26: #{tpu_custom_call.1} parent=23 // pred_check_branch
          %178 = sbr.rel (%p176) target = $region28
        $region27: #{tpu_custom_call.1} parent=23 // pred_region
          %s179 = sand.u32 %s31, 1
          %s180 = scalar_lea.sflag [#allocation3], %s179
          %s181 = sand.u32 %s31, 1
          %s182 = smul.addr %s181, 4
          %s183 = scalar_lea.vmem [#allocation2], %s182
          %s185 = ssub.s32 64, 64
          %186 = vsyncadd %s180, %s185
          %s187 = smul.addr %s21, 64
          %s188 = scalar_lea.hbm %s0, %s187
          %s190 = sshll.u32 %s183, 4
          %s191 = int_to_ptr.vmem [resolvable:$true] %s190
          %193 = dma.hbm_to_vmem [thread:$0]  %s188, 64, %s191, %s180
        $region28: #{tpu_custom_call.1} parent=23 // pred_fallthru
          _
      $region24: #{tpu_custom_call.1} parent=5 // pred_fallthru
        _
      %p194 = scmp.le.s32.totalorder 1, %s21
      %p195 = scmp.lt.s32.totalorder %s21, 5
      %p196 = pnand %p194, %p195
      %p197 = pneg %p196
      // Predicated region
      $region29: #{tpu_custom_call.1} parent=5 // pred_check
        _
      $region30: #{tpu_custom_call.1} parent=5 // pred_check_branch
        %199 = sbr.rel (%p196) target = $region32
      $region31: #{tpu_custom_call.1} parent=5 // pred_region
        %s200 = ssub.s32 %s21, 1
        %s201 = sand.u32 %s34, 1
        %s202 = scalar_lea.sflag [#allocation3], %s201
        %s203 = sand.u32 %s34, 1
        %s204 = smul.addr %s203, 4
        %s205 = scalar_lea.vmem [#allocation2], %s204
        // Predicated region
        $region33: #{tpu_custom_call.1} parent=31 // pred_check
          %p206 = pneg %p47
        $region34: #{tpu_custom_call.1} parent=31 // pred_check_branch
          %208 = sbr.rel (%p206) target = $region36
        $region35: #{tpu_custom_call.1} parent=31 // pred_region
          %209 = dma.done %s202, 64
        $region36: #{tpu_custom_call.1} parent=31 // pred_fallthru
          _
        // Predicated region
        $region37: #{tpu_custom_call.1} parent=31 // pred_check
          %p210 = pneg %p68
        $region38: #{tpu_custom_call.1} parent=31 // pred_check_branch
          %212 = sbr.rel (%p210) target = $region40
        $region39: #{tpu_custom_call.1} parent=31 // pred_region
          %213 = dma.done [#allocation6], 256
        $region40: #{tpu_custom_call.1} parent=31 // pred_fallthru
          _
        %s214 = sand.u32 %s34, 1
        %s215 = scalar_lea.sflag [#allocation3], %s214
        %s216 = sand.u32 %s34, 1
        %s217 = smul.addr %s216, 4
        %s218 = scalar_lea.vmem [#allocation2], %s217
        %p219 = pneg %p47
        %p220 = pneg %p44
        %p221 = pneg %p68
        %p222 = pneg %p65
        %p223 = pneg %p89
        %p224 = pneg %p86
        %p225 = pneg %p115
        %p226 = pneg %p112
        %s227 = sand.u32 %s102, 1
        %s228 = scalar_lea.sflag [#allocation4], %s227
        %s229 = sand.u32 %s102, 1
        %s230 = smul.addr %s229, 8
        %s231 = scalar_lea.vmem [#allocation7], %s230
        %p232 = pneg %p141
        %p233 = pneg %p138
        %s234 = sand.u32 %s128, 1
        %s235 = scalar_lea.sflag [#allocation9], %s234
        %s236 = sand.u32 %s128, 1
        %s237 = smul.addr %s236, 32
        %s238 = scalar_lea.vmem [#allocation8], %s237
        %v240 = vld [vmem:[%s205] sm:$0xf]
        %v241 = vld [vmem:[#allocation5] sm:$0xf]
        %v242 = vld [vmem:[#allocation5 + $0x4] sm:$0xf]
        %v243 = vld [vmem:[#allocation5 + $0x8] sm:$0xf]
        %v244 = vld [vmem:[#allocation5 + $0xc] sm:$0xf]
        %v245 = vld [vmem:[%s2] sm:$0x1]
        %v247 = vlaneseq
        %v248 = vshrl.u32 %v247, 7
        %v249 = vsub.s32 0, %v248
        %v250 = vrot.slane %v245, %v249
        %v256 = vunpack.c.l.b16 %v241
        %v257 = vunpack.c.l.b16 %v242
        %v258 = vunpack.c.l.b16 %v243
        %v259 = vunpack.c.l.b16 %v244
        %v260 = vpack.c.b16 %v257, %v256
        %v261 = vpack.c.b16 %v259, %v258
        %vm264 = vcmask 261120
        %v266 = vsel %vm264, %v240, 0
        %268 = vmatprep.subr.bf16.mxu0 0
        %269 = vmatpush1.bf16.msra.mxu0 %v260
        %270 = vmatprep.subr.bf16.mxu0 0
        %271 = vmatpush1.bf16.msra.mxu0 %v261
        %272 = vmatprep.subr.bf16.mxu0 0
        %273 = vmatpush1.bf16.msra.mxu0 0
        %274 = vmatprep.subr.bf16.mxu0 0
        %275 = vmatpush1.bf16.msra.mxu0 0
        %276 = vmatprep.subr.bf16.mxu0 0
        %277 = vmatpush1.bf16.msra.mxu0 0
        %278 = vmatprep.subr.bf16.mxu0 0
        %279 = vmatpush1.bf16.msra.mxu0 0
        %280 = vmatprep.subr.bf16.mxu0 0
        %281 = vmatpush1.bf16.msra.mxu0 0
        %282 = vmatprep.subr.bf16.mxu0 0
        %283 = vmatpush1.bf16.msra.mxu0 0
        %284 = vmatprep.subr.bf16.mxu0 0
        %285 = vmatpush1.bf16.msra.mxu0 0
        %286 = vmatprep.subr.bf16.mxu0 0
        %287 = vmatpush1.bf16.msra.mxu0 0
        %288 = vmatprep.subr.bf16.mxu0 0
        %289 = vmatpush1.bf16.msra.mxu0 0
        %290 = vmatprep.subr.bf16.mxu0 0
        %291 = vmatpush1.bf16.msra.mxu0 0
        %292 = vmatprep.subr.bf16.mxu0 0
        %293 = vmatpush1.bf16.msra.mxu0 0
        %294 = vmatprep.subr.bf16.mxu0 0
        %295 = vmatpush1.bf16.msra.mxu0 0
        %296 = vmatprep.subr.bf16.mxu0 0
        %297 = vmatpush1.bf16.msra.mxu0 0
        %298 = vmatprep.subr.bf16.mxu0 0
        %299 = vmatpush1.bf16.msra.mxu0 0
        %300 = vmatprep.mubr.bf16.mxu0 0
        %301 = vmatmul.mubr.bf16.gmra.mrb[0].mxu0 %v266
        %v302 = vpop.f32.mrb[0].mxu0
        %v303 = vadd.f32 %v250, %v302
        %v304 = vpop.f32.mrb[0].mxu0
        %v305 = vpop.f32.mrb[0].mxu0
        %v306 = vpop.f32.mrb[0].mxu0
        %307 = vdwg.mxu0
        %v308 = vpack.c.bf16 %v303, %v303
        %vm309 = vcmask 64512
        %v311 = vsel %vm309, %v308, 0
        %313 = vmatprep.subr.bf16.mxu0 0
        %314 = vmatpush1.bf16.xpose.msra.mxu0 %v311
        %315 = vmatprep.subr.bf16.mxu0 0
        %316 = vmatpush1.bf16.xpose.msra.mxu0 0
        %317 = vmatprep.subr.bf16.mxu0 0
        %318 = vmatpush1.bf16.xpose.msra.mxu0 0
        %319 = vmatprep.subr.bf16.mxu0 0
        %320 = vmatpush1.bf16.xpose.msra.mxu0 0
        %321 = vmatprep.subr.bf16.mxu0 0
        %322 = vmatpush1.bf16.xpose.msra.mxu0 0
        %323 = vmatprep.subr.bf16.mxu0 0
        %324 = vmatpush1.bf16.xpose.msra.mxu0 0
        %325 = vmatprep.subr.bf16.mxu0 0
        %326 = vmatpush1.bf16.xpose.msra.mxu0 0
        %327 = vmatprep.subr.bf16.mxu0 0
        %328 = vmatpush1.bf16.xpose.msra.mxu0 0
        %329 = vmatprep.subr.bf16.mxu0 0
        %330 = vmatpush1.bf16.xpose.msra.mxu0 0
        %331 = vmatprep.subr.bf16.mxu0 0
        %332 = vmatpush1.bf16.xpose.msra.mxu0 0
        %333 = vmatprep.subr.bf16.mxu0 0
        %334 = vmatpush1.bf16.xpose.msra.mxu0 0
        %335 = vmatprep.subr.bf16.mxu0 0
        %336 = vmatpush1.bf16.xpose.msra.mxu0 0
        %337 = vmatprep.subr.bf16.mxu0 0
        %338 = vmatpush1.bf16.xpose.msra.mxu0 0
        %339 = vmatprep.subr.bf16.mxu0 0
        %340 = vmatpush1.bf16.xpose.msra.mxu0 0
        %341 = vmatprep.subr.bf16.mxu0 0
        %342 = vmatpush1.bf16.xpose.msra.mxu0 0
        %343 = vmatprep.subr.bf16.mxu0 0
        %344 = vmatpush1.bf16.xpose.msra.mxu0 0
        %345 = vmatprep.mubr.bf16.mxu0 0
        %346 = vmatmul.mubr.bf16.gmra.mrb[0].mxu0 %v311
        %v347 = vpop.f32.mrb[0].mxu0
        %v348 = vadd.f32 0.0, %v347
        %v349 = vpop.f32.mrb[0].mxu0
        %v350 = vpop.f32.mrb[0].mxu0
        %v351 = vpop.f32.mrb[0].mxu0
        %352 = vdwg.mxu0
        %v353 = vsel %vm309, %v348, -inf
        %354 = vmax.xlane.f32.xlu0 %v353
        %v355 = vpop.xlane.xlu0 %354
        %v356 = vsub.f32 %v348, %v355
        %v357 = vmul.f32 %v356, 1.442695
        %v358 = vpow.pop %v357
        %v359 = vsel %vm309, %v358, 0.0
        %360 = vadd.xlane.f32.xlu0 %v359
        %v361 = vpop.xlane.xlu0 %360
        %v362 = vrcp.pop %v361
        %v363 = vmul.f32 %v358, %v362
        %364 = vst.msk [vmem:[%s238] sm:$0xff] %vm309, %v363
        %v365 = vpack.c.bf16 %v363, %v363
        %v367 = vsel %vm309, %v365, 0
        %vm369 = vcmask 1043456
        %v370 = vsel %vm369, %v308, 0
        %372 = vmatprep.subr.bf16.mxu0 0
        %373 = vmatpush1.bf16.msra.mxu0 %v370
        %374 = vmatprep.subr.bf16.mxu0 0
        %375 = vmatpush1.bf16.msra.mxu0 0
        %376 = vmatprep.subr.bf16.mxu0 0
        %377 = vmatpush1.bf16.msra.mxu0 0
        %378 = vmatprep.subr.bf16.mxu0 0
        %379 = vmatpush1.bf16.msra.mxu0 0
        %380 = vmatprep.subr.bf16.mxu0 0
        %381 = vmatpush1.bf16.msra.mxu0 0
        %382 = vmatprep.subr.bf16.mxu0 0
        %383 = vmatpush1.bf16.msra.mxu0 0
        %384 = vmatprep.subr.bf16.mxu0 0
        %385 = vmatpush1.bf16.msra.mxu0 0
        %386 = vmatprep.subr.bf16.mxu0 0
        %387 = vmatpush1.bf16.msra.mxu0 0
        %388 = vmatprep.subr.bf16.mxu0 0
        %389 = vmatpush1.bf16.msra.mxu0 0
        %390 = vmatprep.subr.bf16.mxu0 0
        %391 = vmatpush1.bf16.msra.mxu0 0
        %392 = vmatprep.subr.bf16.mxu0 0
        %393 = vmatpush1.bf16.msra.mxu0 0
        %394 = vmatprep.subr.bf16.mxu0 0
        %395 = vmatpush1.bf16.msra.mxu0 0
        %396 = vmatprep.subr.bf16.mxu0 0
        %397 = vmatpush1.bf16.msra.mxu0 0
        %398 = vmatprep.subr.bf16.mxu0 0
        %399 = vmatpush1.bf16.msra.mxu0 0
        %400 = vmatprep.subr.bf16.mxu0 0
        %401 = vmatpush1.bf16.msra.mxu0 0
        %402 = vmatprep.subr.bf16.mxu0 0
        %403 = vmatpush1.bf16.msra.mxu0 0
        %404 = vmatprep.mubr.bf16.mxu0 0
        %405 = vmatmul.mubr.bf16.gmra.mrb[0].mxu0 %v367
        %v406 = vpop.f32.mrb[0].mxu0
        %v407 = vadd.f32 0.0, %v406
        %v408 = vpop.f32.mrb[0].mxu0
        %v409 = vpop.f32.mrb[0].mxu0
        %v410 = vpop.f32.mrb[0].mxu0
        %411 = vdwg.mxu0
        %413 = vrot.lane.b32.xlu0 %v308, 120
        %v414 = vpop.permute.xlu0 %413
        %v416 = vsel %vm309, %v414, 0
        %418 = vmatprep.subr.bf16.mxu0 0
        %419 = vmatpush1.bf16.xpose.msra.mxu0 %v416
        %420 = vmatprep.subr.bf16.mxu0 0
        %421 = vmatpush1.bf16.xpose.msra.mxu0 0
        %422 = vmatprep.subr.bf16.mxu0 0
        %423 = vmatpush1.bf16.xpose.msra.mxu0 0
        %424 = vmatprep.subr.bf16.mxu0 0
        %425 = vmatpush1.bf16.xpose.msra.mxu0 0
        %426 = vmatprep.subr.bf16.mxu0 0
        %427 = vmatpush1.bf16.xpose.msra.mxu0 0
        %428 = vmatprep.subr.bf16.mxu0 0
        %429 = vmatpush1.bf16.xpose.msra.mxu0 0
        %430 = vmatprep.subr.bf16.mxu0 0
        %431 = vmatpush1.bf16.xpose.msra.mxu0 0
        %432 = vmatprep.subr.bf16.mxu0 0
        %433 = vmatpush1.bf16.xpose.msra.mxu0 0
        %434 = vmatprep.subr.bf16.mxu0 0
        %435 = vmatpush1.bf16.xpose.msra.mxu0 0
        %436 = vmatprep.subr.bf16.mxu0 0
        %437 = vmatpush1.bf16.xpose.msra.mxu0 0
        %438 = vmatprep.subr.bf16.mxu0 0
        %439 = vmatpush1.bf16.xpose.msra.mxu0 0
        %440 = vmatprep.subr.bf16.mxu0 0
        %441 = vmatpush1.bf16.xpose.msra.mxu0 0
        %442 = vmatprep.subr.bf16.mxu0 0
        %443 = vmatpush1.bf16.xpose.msra.mxu0 0
        %444 = vmatprep.subr.bf16.mxu0 0
        %445 = vmatpush1.bf16.xpose.msra.mxu0 0
        %446 = vmatprep.subr.bf16.mxu0 0
        %447 = vmatpush1.bf16.xpose.msra.mxu0 0
        %448 = vmatprep.subr.bf16.mxu0 0
        %449 = vmatpush1.bf16.xpose.msra.mxu0 0
        %450 = vmatprep.mubr.bf16.mxu0 0
        %451 = vmatmul.mubr.bf16.gmra.mrb[0].mxu0 %v416
        %v452 = vpop.f32.mrb[0].mxu0
        %v453 = vadd.f32 0.0, %v452
        %v454 = vpop.f32.mrb[0].mxu0
        %v455 = vpop.f32.mrb[0].mxu0
        %v456 = vpop.f32.mrb[0].mxu0
        %457 = vdwg.mxu0
        %v458 = vsel %vm309, %v453, -inf
        %459 = vmax.xlane.f32.xlu0 %v458
        %v460 = vpop.xlane.xlu0 %459
        %v461 = vsub.f32 %v453, %v460
        %v462 = vmul.f32 %v461, 1.442695
        %v463 = vpow.pop %v462
        %v464 = vsel %vm309, %v463, 0.0
        %465 = vadd.xlane.f32.xlu0 %v464
        %v466 = vpop.xlane.xlu0 %465
        %v467 = vrcp.pop %v466
        %v468 = vmul.f32 %v463, %v467
        %s469 = scalar_lea.vmem %s238, 8 [#allocation8]
        %470 = vst.msk [vmem:[%s469] sm:$0xff] %vm309, %v468
        %v471 = vpack.c.bf16 %v468, %v468
        %v473 = vsel %vm309, %v471, 0
        %v475 = vsel %vm369, %v414, 0
        %477 = vmatprep.subr.bf16.mxu0 0
        %478 = vmatpush1.bf16.msra.mxu0 %v475
        %479 = vmatprep.subr.bf16.mxu0 0
        %480 = vmatpush1.bf16.msra.mxu0 0
        %481 = vmatprep.subr.bf16.mxu0 0
        %482 = vmatpush1.bf16.msra.mxu0 0
        %483 = vmatprep.subr.bf16.mxu0 0
        %484 = vmatpush1.bf16.msra.mxu0 0
        %485 = vmatprep.subr.bf16.mxu0 0
        %486 = vmatpush1.bf16.msra.mxu0 0
        %487 = vmatprep.subr.bf16.mxu0 0
        %488 = vmatpush1.bf16.msra.mxu0 0
        %489 = vmatprep.subr.bf16.mxu0 0
        %490 = vmatpush1.bf16.msra.mxu0 0
        %491 = vmatprep.subr.bf16.mxu0 0
        %492 = vmatpush1.bf16.msra.mxu0 0
        %493 = vmatprep.subr.bf16.mxu0 0
        %494 = vmatpush1.bf16.msra.mxu0 0
        %495 = vmatprep.subr.bf16.mxu0 0
        %496 = vmatpush1.bf16.msra.mxu0 0
        %497 = vmatprep.subr.bf16.mxu0 0
        %498 = vmatpush1.bf16.msra.mxu0 0
        %499 = vmatprep.subr.bf16.mxu0 0
        %500 = vmatpush1.bf16.msra.mxu0 0
        %501 = vmatprep.subr.bf16.mxu0 0
        %502 = vmatpush1.bf16.msra.mxu0 0
        %503 = vmatprep.subr.bf16.mxu0 0
        %504 = vmatpush1.bf16.msra.mxu0 0
        %505 = vmatprep.subr.bf16.mxu0 0
        %506 = vmatpush1.bf16.msra.mxu0 0
        %507 = vmatprep.subr.bf16.mxu0 0
        %508 = vmatpush1.bf16.msra.mxu0 0
        %509 = vmatprep.mubr.bf16.mxu0 0
        %510 = vmatmul.mubr.bf16.gmra.mrb[0].mxu0 %v473
        %v511 = vpop.f32.mrb[0].mxu0
        %v512 = vadd.f32 0.0, %v511
        %v513 = vpop.f32.mrb[0].mxu0
        %v514 = vpop.f32.mrb[0].mxu0
        %v515 = vpop.f32.mrb[0].mxu0
        %516 = vdwg.mxu0
        %517 = vrot.lane.b32.xlu0 %v308, 112
        %v518 = vpop.permute.xlu0 %517
        %v520 = vsel %vm309, %v518, 0
        %522 = vmatprep.subr.bf16.mxu0 0
        %523 = vmatpush1.bf16.xpose.msra.mxu0 %v520
        %524 = vmatprep.subr.bf16.mxu0 0
        %525 = vmatpush1.bf16.xpose.msra.mxu0 0
        %526 = vmatprep.subr.bf16.mxu0 0
        %527 = vmatpush1.bf16.xpose.msra.mxu0 0
        %528 = vmatprep.subr.bf16.mxu0 0
        %529 = vmatpush1.bf16.xpose.msra.mxu0 0
        %530 = vmatprep.subr.bf16.mxu0 0
        %531 = vmatpush1.bf16.xpose.msra.mxu0 0
        %532 = vmatprep.subr.bf16.mxu0 0
        %533 = vmatpush1.bf16.xpose.msra.mxu0 0
        %534 = vmatprep.subr.bf16.mxu0 0
        %535 = vmatpush1.bf16.xpose.msra.mxu0 0
        %536 = vmatprep.subr.bf16.mxu0 0
        %537 = vmatpush1.bf16.xpose.msra.mxu0 0
        %538 = vmatprep.subr.bf16.mxu0 0
        %539 = vmatpush1.bf16.xpose.msra.mxu0 0
        %540 = vmatprep.subr.bf16.mxu0 0
        %541 = vmatpush1.bf16.xpose.msra.mxu0 0
        %542 = vmatprep.subr.bf16.mxu0 0
        %543 = vmatpush1.bf16.xpose.msra.mxu0 0
        %544 = vmatprep.subr.bf16.mxu0 0
        %545 = vmatpush1.bf16.xpose.msra.mxu0 0
        %546 = vmatprep.subr.bf16.mxu0 0
        %547 = vmatpush1.bf16.xpose.msra.mxu0 0
        %548 = vmatprep.subr.bf16.mxu0 0
        %549 = vmatpush1.bf16.xpose.msra.mxu0 0
        %550 = vmatprep.subr.bf16.mxu0 0
        %551 = vmatpush1.bf16.xpose.msra.mxu0 0
        %552 = vmatprep.subr.bf16.mxu0 0
        %553 = vmatpush1.bf16.xpose.msra.mxu0 0
        %554 = vmatprep.mubr.bf16.mxu0 0
        %555 = vmatmul.mubr.bf16.gmra.mrb[0].mxu0 %v520
        %v556 = vpop.f32.mrb[0].mxu0
        %v557 = vadd.f32 0.0, %v556
        %v558 = vpop.f32.mrb[0].mxu0
        %v559 = vpop.f32.mrb[0].mxu0
        %v560 = vpop.f32.mrb[0].mxu0
        %561 = vdwg.mxu0
        %v562 = vsel %vm309, %v557, -inf
        %563 = vmax.xlane.f32.xlu0 %v562
        %v564 = vpop.xlane.xlu0 %563
        %v565 = vsub.f32 %v557, %v564
        %v566 = vmul.f32 %v565, 1.442695
        %v567 = vpow.pop %v566
        %v568 = vsel %vm309, %v567, 0.0
        %569 = vadd.xlane.f32.xlu0 %v568
        %v570 = vpop.xlane.xlu0 %569
        %v571 = vrcp.pop %v570
        %v572 = vmul.f32 %v567, %v571
        %s573 = scalar_lea.vmem %s238, 16 [#allocation8]
        %574 = vst.msk [vmem:[%s573] sm:$0xff] %vm309, %v572
        %v575 = vpack.c.bf16 %v572, %v572
        %v577 = vsel %vm309, %v575, 0
        %v579 = vsel %vm369, %v518, 0
        %581 = vmatprep.subr.bf16.mxu0 0
        %582 = vmatpush1.bf16.msra.mxu0 %v579
        %583 = vmatprep.subr.bf16.mxu0 0
        %584 = vmatpush1.bf16.msra.mxu0 0
        %585 = vmatprep.subr.bf16.mxu0 0
        %586 = vmatpush1.bf16.msra.mxu0 0
        %587 = vmatprep.subr.bf16.mxu0 0
        %588 = vmatpush1.bf16.msra.mxu0 0
        %589 = vmatprep.subr.bf16.mxu0 0
        %590 = vmatpush1.bf16.msra.mxu0 0
        %591 = vmatprep.subr.bf16.mxu0 0
        %592 = vmatpush1.bf16.msra.mxu0 0
        %593 = vmatprep.subr.bf16.mxu0 0
        %594 = vmatpush1.bf16.msra.mxu0 0
        %595 = vmatprep.subr.bf16.mxu0 0
        %596 = vmatpush1.bf16.msra.mxu0 0
        %597 = vmatprep.subr.bf16.mxu0 0
        %598 = vmatpush1.bf16.msra.mxu0 0
        %599 = vmatprep.subr.bf16.mxu0 0
        %600 = vmatpush1.bf16.msra.mxu0 0
        %601 = vmatprep.subr.bf16.mxu0 0
        %602 = vmatpush1.bf16.msra.mxu0 0
        %603 = vmatprep.subr.bf16.mxu0 0
        %604 = vmatpush1.bf16.msra.mxu0 0
        %605 = vmatprep.subr.bf16.mxu0 0
        %606 = vmatpush1.bf16.msra.mxu0 0
        %607 = vmatprep.subr.bf16.mxu0 0
        %608 = vmatpush1.bf16.msra.mxu0 0
        %609 = vmatprep.subr.bf16.mxu0 0
        %610 = vmatpush1.bf16.msra.mxu0 0
        %611 = vmatprep.subr.bf16.mxu0 0
        %612 = vmatpush1.bf16.msra.mxu0 0
        %613 = vmatprep.mubr.bf16.mxu0 0
        %614 = vmatmul.mubr.bf16.gmra.mrb[0].mxu0 %v577
        %v615 = vpop.f32.mrb[0].mxu0
        %v616 = vadd.f32 0.0, %v615
        %v617 = vpop.f32.mrb[0].mxu0
        %v618 = vpop.f32.mrb[0].mxu0
        %v619 = vpop.f32.mrb[0].mxu0
        %620 = vdwg.mxu0
        %621 = vrot.lane.b32.xlu0 %v308, 104
        %v622 = vpop.permute.xlu0 %621
        %v624 = vsel %vm309, %v622, 0
        %626 = vmatprep.subr.bf16.mxu0 0
        %627 = vmatpush1.bf16.xpose.msra.mxu0 %v624
        %628 = vmatprep.subr.bf16.mxu0 0
        %629 = vmatpush1.bf16.xpose.msra.mxu0 0
        %630 = vmatprep.subr.bf16.mxu0 0
        %631 = vmatpush1.bf16.xpose.msra.mxu0 0
        %632 = vmatprep.subr.bf16.mxu0 0
        %633 = vmatpush1.bf16.xpose.msra.mxu0 0
        %634 = vmatprep.subr.bf16.mxu0 0
        %635 = vmatpush1.bf16.xpose.msra.mxu0 0
        %636 = vmatprep.subr.bf16.mxu0 0
        %637 = vmatpush1.bf16.xpose.msra.mxu0 0
        %638 = vmatprep.subr.bf16.mxu0 0
        %639 = vmatpush1.bf16.xpose.msra.mxu0 0
        %640 = vmatprep.subr.bf16.mxu0 0
        %641 = vmatpush1.bf16.xpose.msra.mxu0 0
        %642 = vmatprep.subr.bf16.mxu0 0
        %643 = vmatpush1.bf16.xpose.msra.mxu0 0
        %644 = vmatprep.subr.bf16.mxu0 0
        %645 = vmatpush1.bf16.xpose.msra.mxu0 0
        %646 = vmatprep.subr.bf16.mxu0 0
        %647 = vmatpush1.bf16.xpose.msra.mxu0 0
        %648 = vmatprep.subr.bf16.mxu0 0
        %649 = vmatpush1.bf16.xpose.msra.mxu0 0
        %650 = vmatprep.subr.bf16.mxu0 0
        %651 = vmatpush1.bf16.xpose.msra.mxu0 0
        %652 = vmatprep.subr.bf16.mxu0 0
        %653 = vmatpush1.bf16.xpose.msra.mxu0 0
        %654 = vmatprep.subr.bf16.mxu0 0
        %655 = vmatpush1.bf16.xpose.msra.mxu0 0
        %656 = vmatprep.subr.bf16.mxu0 0
        %657 = vmatpush1.bf16.xpose.msra.mxu0 0
        %658 = vmatprep.mubr.bf16.mxu0 0
        %659 = vmatmul.mubr.bf16.gmra.mrb[0].mxu0 %v624
        %v660 = vpop.f32.mrb[0].mxu0
        %v661 = vadd.f32 0.0, %v660
        %v662 = vpop.f32.mrb[0].mxu0
        %v663 = vpop.f32.mrb[0].mxu0
        %v664 = vpop.f32.mrb[0].mxu0
        %665 = vdwg.mxu0
        %v666 = vsel %vm309, %v661, -inf
        %667 = vmax.xlane.f32.xlu0 %v666
        %v668 = vpop.xlane.xlu0 %667
        %v669 = vsub.f32 %v661, %v668
        %v670 = vmul.f32 %v669, 1.442695
        %v671 = vpow.pop %v670
        %v672 = vsel %vm309, %v671, 0.0
        %673 = vadd.xlane.f32.xlu0 %v672
        %v674 = vpop.xlane.xlu0 %673
        %v675 = vrcp.pop %v674
        %v676 = vmul.f32 %v671, %v675
        %s677 = scalar_lea.vmem %s238, 24 [#allocation8]
        %678 = vst.msk [vmem:[%s677] sm:$0xff] %vm309, %v676
        %v679 = vpack.c.bf16 %v676, %v676
        %v681 = vsel %vm309, %v679, 0
        %v683 = vsel %vm369, %v622, 0
        %685 = vmatprep.subr.bf16.mxu0 0
        %686 = vmatpush1.bf16.msra.mxu0 %v683
        %687 = vmatprep.subr.bf16.mxu0 0
        %688 = vmatpush1.bf16.msra.mxu0 0
        %689 = vmatprep.subr.bf16.mxu0 0
        %690 = vmatpush1.bf16.msra.mxu0 0
        %691 = vmatprep.subr.bf16.mxu0 0
        %692 = vmatpush1.bf16.msra.mxu0 0
        %693 = vmatprep.subr.bf16.mxu0 0
        %694 = vmatpush1.bf16.msra.mxu0 0
        %695 = vmatprep.subr.bf16.mxu0 0
        %696 = vmatpush1.bf16.msra.mxu0 0
        %697 = vmatprep.subr.bf16.mxu0 0
        %698 = vmatpush1.bf16.msra.mxu0 0
        %699 = vmatprep.subr.bf16.mxu0 0
        %700 = vmatpush1.bf16.msra.mxu0 0
        %701 = vmatprep.subr.bf16.mxu0 0
        %702 = vmatpush1.bf16.msra.mxu0 0
        %703 = vmatprep.subr.bf16.mxu0 0
        %704 = vmatpush1.bf16.msra.mxu0 0
        %705 = vmatprep.subr.bf16.mxu0 0
        %706 = vmatpush1.bf16.msra.mxu0 0
        %707 = vmatprep.subr.bf16.mxu0 0
        %708 = vmatpush1.bf16.msra.mxu0 0
        %709 = vmatprep.subr.bf16.mxu0 0
        %710 = vmatpush1.bf16.msra.mxu0 0
        %711 = vmatprep.subr.bf16.mxu0 0
        %712 = vmatpush1.bf16.msra.mxu0 0
        %713 = vmatprep.subr.bf16.mxu0 0
        %714 = vmatpush1.bf16.msra.mxu0 0
        %715 = vmatprep.subr.bf16.mxu0 0
        %716 = vmatpush1.bf16.msra.mxu0 0
        %717 = vmatprep.mubr.bf16.mxu0 0
        %718 = vmatmul.mubr.bf16.gmra.mrb[0].mxu0 %v681
        %v719 = vpop.f32.mrb[0].mxu0
        %v720 = vadd.f32 0.0, %v719
        %v721 = vpop.f32.mrb[0].mxu0
        %v722 = vpop.f32.mrb[0].mxu0
        %v723 = vpop.f32.mrb[0].mxu0
        %724 = vdwg.mxu0
        %726 = vrot.lane.b32.xlu0 %v512, 8
        %v727 = vpop.permute.xlu0 %726
        %730 = vrot.lane.b32.xlu0 %v616, 16
        %v731 = vpop.permute.xlu0 %730
        %734 = vrot.lane.b32.xlu0 %v720, 24
        %v735 = vpop.permute.xlu0 %734
        %v737 = vsel %vm309, %v407, %v727
        %vm738 = vcmask 130048
        %v739 = vsel %vm738, %v737, %v731
        %vm740 = vcmask 195584
        %v741 = vsel %vm740, %v739, %v735
        %743 = vrot.lane.b32.xlu0 %v303, 96
        %v744 = vpop.permute.xlu0 %743
        %v746 = vadd.f32 %v741, %v744
        %v747 = vmax.f32 %v746, 0.0
        %748 = vst.msk [vmem:[%s231] sm:$0xff] %vm264, %v747
        %s749 = sand.u32 %s102, 1
        %s750 = scalar_lea.sflag [#allocation4], %s749
        %s751 = sand.u32 %s102, 1
        %s752 = smul.addr %s751, 8
        %s753 = scalar_lea.vmem [#allocation7], %s752
        %s754 = sand.u32 %s128, 1
        %s755 = scalar_lea.sflag [#allocation9], %s754
        %s756 = sand.u32 %s128, 1
        %s757 = smul.addr %s756, 32
        %s758 = scalar_lea.vmem [#allocation8], %s757
        // Predicated region
        $region41: #{tpu_custom_call.1} parent=31 // pred_check
          %p759 = pneg %p112
        $region42: #{tpu_custom_call.1} parent=31 // pred_check_branch
          %761 = sbr.rel (%p759) target = $region44
        $region43: #{tpu_custom_call.1} parent=31 // pred_region
          %s763 = ssub.s32 128, 128
          %764 = vsyncadd %s750, %s763
          %s765 = smul.addr %s26, 128
          %s766 = scalar_lea.hbm %s3, %s765
          %s768 = sshll.u32 %s753, 4
          %s769 = int_to_ptr.vmem [resolvable:$true] %s768
          %771 = dma.vmem_to_hbm [thread:$0]  %s769, 128, %s766, %s750
        $region44: #{tpu_custom_call.1} parent=31 // pred_fallthru
          _
        // Predicated region
        $region45: #{tpu_custom_call.1} parent=31 // pred_check
          %p772 = pneg %p138
        $region46: #{tpu_custom_call.1} parent=31 // pred_check_branch
          %774 = sbr.rel (%p772) target = $region48
        $region47: #{tpu_custom_call.1} parent=31 // pred_region
          %s776 = ssub.s32 512, 512
          %777 = vsyncadd %s755, %s776
          %s778 = smul.addr %s26, 4
          %s779 = smul.addr %s778, 128
          %s780 = scalar_lea.hbm %s4, %s779
          %s781 = sshll.u32 %s758, 4
          %s782 = int_to_ptr.vmem [resolvable:$true] %s781
          %787 = dma.vmem_to_hbm [thread:$0]  %s782, 512, %s780, %s755, 128, 128, 8
        $region48: #{tpu_custom_call.1} parent=31 // pred_fallthru
          _
      $region32: #{tpu_custom_call.1} parent=5 // pred_fallthru
        _
      %p788 = scmp.le.s32.totalorder 2, %s21
      // Predicated region
      $region49: #{tpu_custom_call.1} parent=5 // pred_check
        %p789 = pneg %p788
      $region50: #{tpu_custom_call.1} parent=5 // pred_check_branch
        %791 = sbr.rel (%p789) target = $region52
      $region51: #{tpu_custom_call.1} parent=5 // pred_region
        %s792 = ssub.s32 %s21, 2
        // Predicated region
        $region53: #{tpu_custom_call.1} parent=51 // pred_check
          %p793 = pneg %p118
        $region54: #{tpu_custom_call.1} parent=51 // pred_check_branch
          %795 = sbr.rel (%p793) target = $region56
        $region55: #{tpu_custom_call.1} parent=51 // pred_region
          %s796 = sand.u32 %s103, 1
          %s797 = scalar_lea.sflag [#allocation4], %s796
          %s798 = sand.u32 %s103, 1
          %s799 = smul.addr %s798, 8
          %s800 = scalar_lea.vmem [#allocation7], %s799
          %801 = dma.done %s797, 128
        $region56: #{tpu_custom_call.1} parent=51 // pred_fallthru
          _
        // Predicated region
        $region57: #{tpu_custom_call.1} parent=51 // pred_check
          %p802 = pneg %p144
        $region58: #{tpu_custom_call.1} parent=51 // pred_check_branch
          %804 = sbr.rel (%p802) target = $region60
        $region59: #{tpu_custom_call.1} parent=51 // pred_region
          %s805 = sand.u32 %s129, 1
          %s806 = scalar_lea.sflag [#allocation9], %s805
          %s807 = sand.u32 %s129, 1
          %s808 = smul.addr %s807, 32
          %s809 = scalar_lea.vmem [#allocation8], %s808
          %810 = dma.done %s806, 512
        $region60: #{tpu_custom_call.1} parent=51 // pred_fallthru
          _
      $region52: #{tpu_custom_call.1} parent=5 // pred_fallthru
        _
    $region6: #{tpu_custom_call.1} parent=1 // loop_footer
      %s25 = sadd.s32 1, %s21
    $region7: #{tpu_custom_call.1} parent=1 // loop_footer_branch
      %20 = sbr.rel target = $region3
    $region8: #{tpu_custom_call.1} parent=1 // loop_exit
      _
    %811 = vsyncpa [#allocation3], 1
    %s812 = scalar_lea.sflag [#allocation3], 1
    %813 = vsyncpa %s812, 1
    %814 = vsyncpa [#allocation6], 1
    %815 = vsyncpa [#allocation4], 1
    %s816 = scalar_lea.sflag [#allocation4], 1
    %817 = vsyncpa %s816, 1
    %818 = vsyncpa [#allocation9], 1
    %s819 = scalar_lea.sflag [#allocation9], 1
    %820 = vsyncpa %s819, 1

</llo_original>
